<compile_context>
chip_gen: v5e
topology: v5e:2x2
jax: 0.10.0
libtpu: 0.0.40
codegen_flags: <defaults>
</compile_context>

<pallas_src>
import functools

import numpy as np
import jax
import jax.numpy as jnp
from jax.experimental import pallas as pl
from jax.experimental.pallas import tpu as pltpu

_NCONST = 7  # [bias, c1(s^2), c2(s), c3(raw), c4x(gx), c4y(gy), c5(const)]


def _pick_spatial_tile(hw, max_tile=2048):
    """Largest multiple of 128 that divides hw and is <= max_tile; else hw."""
    # TODO(synk): levels whose HW is not a multiple of 128 (e.g. 40x40=1600,
    # 20x20=400) fall back to a single full-row block (masked tail stores, one
    # spatial grid step); pad HW to a 128-multiple or fold anchors into the grid
    # if v7x dual-TC utilization of those levels matters.
    best = None
    t = 128
    while t <= min(max_tile, hw):
        if hw % t == 0:
            best = t
        t += 128
    return best if best is not None else hw


def _detect_kernel(x_ref, w_ref, consts_ref, gx_ref, gy_ref, *out_refs,
                   compute_dtype):
    """One (batch, spatial-tile) step of the Detect head.

    x_ref      : (C, T)   input slab in native NCHW order
    w_ref      : (O, C)   1x1 conv weight (compute_dtype)
    consts_ref : (O, 7)   per-output-channel [bias, c1, c2, c3, c4x, c4y, c5]
    gx_ref     : (1, T)   grid x coordinate per spatial position
    gy_ref     : (1, T)   grid y coordinate per spatial position
    out_refs   : (dec_ref,) or (raw_ref, dec_ref); each (O, T)
    """
    # 1x1 conv as MXU matmul: compute_dtype inputs, f32 accumulate. The astype
    # is a no-op at trace time if the producer already delivers compute_dtype.
    x = x_ref[...]
    if x.dtype != compute_dtype:
        x = x.astype(compute_dtype)
    acc = jnp.dot(w_ref[...], x, preferred_element_type=jnp.float32)

    c = consts_ref[...]
    raw = acc + c[:, 0:1]                       # add bias, (O, T) f32

    if len(out_refs) == 2:
        raw_ref, dec_ref = out_refs
        raw_ref[...] = raw.astype(raw_ref.dtype)
    else:
        (dec_ref,) = out_refs

    # sigmoid(x) == 0.5*tanh(0.5*x) + 0.5  -> EUP, keeps the divide off the VALU.
    s = 0.5 * jnp.tanh(0.5 * raw) + 0.5

    # Decode as a single per-channel affine form (coefficients folded host-side):
    #   dec = c1*s^2 + c2*s + c3*raw + c4x*gx + c4y*gy + c5
    # Horner + implicit (O,1)x(1,T) broadcasting; no materialized broadcasts.
    g = c[:, 4:5] * gx_ref[...] + c[:, 5:6] * gy_ref[...] + c[:, 6:7]
    dec = s * (c[:, 1:2] * s + c[:, 2:3]) + c[:, 3:4] * raw + g
    dec_ref[...] = dec.astype(dec_ref.dtype)


def detect_level(x_nchw, weight, bias, anchors_i, stride, no, na, *,
                 compute_dtype=jnp.bfloat16, max_spatial_tile=2048,
                 return_raw=True, raw_dtype=jnp.float32):
    """Run one detection level.

    x_nchw    : (bs, C, H, W) float32 or bfloat16
    weight    : (O, C, 1, 1)  conv 1x1 weight, O = na*no
    bias      : (O,)
    anchors_i : (na, 2)       raw anchors for this level (as in self.anchor_grid)
    Returns (raw_perm or None, z) with raw_perm (bs, na, H, W, no) and
    z (bs, na*H*W, no).
    """
    bs, C, H, W = x_nchw.shape
    O = no * na
    assert weight.shape[0] == O and no >= 17
    HW = H * W
    T = _pick_spatial_tile(HW, max_spatial_tile)

    # ---------------- host-side constant prep (static per level) ----------------
    st = float(stride)
    k = np.arange(O) % no            # channel index within one anchor
    a = np.arange(O) // no           # anchor index
    anc = np.asarray(anchors_i, np.float32).reshape(na, 2)
    aw, ah = anc[a, 0], anc[a, 1]

    c1 = np.zeros(O, np.float32); c2 = np.zeros(O, np.float32)
    c3 = np.zeros(O, np.float32); c4x = np.zeros(O, np.float32)
    c4y = np.zeros(O, np.float32); c5 = np.zeros(O, np.float32)

    box_x, box_y = (k == 0), (k == 1)
    box_w, box_h = (k == 2), (k == 3)
    sig_only = (k == 4) | (k >= 17)                 # objectness + class scores
    lm = (k >= 5) & (k < 17)                        # 6 landmark (x, y) pairs
    lm_x = lm & ((k - 5) % 2 == 0)
    lm_y = lm & ((k - 5) % 2 == 1)

    c2[box_x | box_y] = 2.0 * st                    # (2s - 0.5 + g) * stride
    c4x[box_x] = st
    c4y[box_y] = st
    c5[box_x | box_y] = -0.5 * st
    c1[box_w] = 4.0 * aw[box_w]                     # (2s)^2 * anchor
    c1[box_h] = 4.0 * ah[box_h]
    c2[sig_only] = 1.0                              # plain sigmoid
    c3[lm_x] = aw[lm_x]                             # raw*anchor + grid*stride
    c3[lm_y] = ah[lm_y]
    c4x[lm_x] = st
    c4y[lm_y] = st
    coef = np.stack([c1, c2, c3, c4x, c4y, c5], axis=1)          # (O, 6)

    sp = np.arange(HW, dtype=np.int64)
    gx_row = jnp.asarray((sp % W).astype(np.float32)[None, :])   # (1, HW)
    gy_row = jnp.asarray((sp // W).astype(np.float32)[None, :])  # (1, HW)

    consts = jnp.concatenate(
        [bias.reshape(O, 1).astype(jnp.float32), jnp.asarray(coef)], axis=1)  # (O, 7)

    w2d = weight.reshape(O, C).astype(compute_dtype)             # (O, C)

    x3 = x_nchw.reshape(bs, C, HW)   # free: NCHW is already (b, c, y*W + x)

    kernel = functools.partial(_detect_kernel, compute_dtype=compute_dtype)

    out_shapes, out_specs = [], []
    if return_raw:
        out_shapes.append(jax.ShapeDtypeStruct((bs, O, HW), raw_dtype))
        out_specs.append(pl.BlockSpec((None, O, T), lambda b, t: (b, 0, t)))
    out_shapes.append(jax.ShapeDtypeStruct((bs, O, HW), jnp.float32))
    out_specs.append(pl.BlockSpec((None, O, T), lambda b, t: (b, 0, t)))

    outs = pl.pallas_call(
        kernel,
        out_shape=tuple(out_shapes),
        grid_spec=pltpu.PrefetchScalarGridSpec(
            num_scalar_prefetch=0,
            grid=(bs, HW // T),
            in_specs=[
                pl.BlockSpec((None, C, T), lambda b, t: (b, 0, t)),
                pl.BlockSpec((O, C), lambda b, t: (0, 0)),
                pl.BlockSpec((O, _NCONST), lambda b, t: (0, 0)),
                pl.BlockSpec((1, T), lambda b, t: (0, t)),
                pl.BlockSpec((1, T), lambda b, t: (0, t)),
            ],
            out_specs=out_specs,
        ),
        compiler_params=pltpu.CompilerParams(
            dimension_semantics=("parallel", "parallel"),
            vmem_limit_bytes=32 * 1024 * 1024),
    )(x3, w2d, consts, gx_row, gy_row)

    if return_raw:
        raw_flat, dec_flat = outs
        # Same view+permute the torch module pays (.permute().contiguous()).
        raw_perm = raw_flat.reshape(bs, na, no, H, W).transpose(0, 1, 3, 4, 2)
    else:
        (dec_flat,) = outs
        raw_perm = None

    # Single (..., no)-last permute in the inference path, for dec only.
    # TODO(synk): z could stay channel-major until after NMS/thresholding; the
    # torch output convention requires (bs, na*H*W, no) so we permute here.
    dec_perm = dec_flat.reshape(bs, na, no, H, W).transpose(0, 1, 3, 4, 2)
    z = dec_perm.reshape(bs, na * H * W, no)
    return raw_perm, z


def detect_forward(xs, params, anchors, strides, no, na, *,
                   compute_dtype=jnp.bfloat16, return_raw=True,
                   raw_dtype=jnp.float32):
    """Full Detect eval forward: returns (cat(z, 1), [x_perm per level] or None)."""
    # TODO(synk): training-mode early return and the export_cat branch are not
    # implemented; only the default eval decode path is.
    # TODO(synk): per-level z pieces are still joined with jnp.concatenate; a
    # single fused pallas_call writing into the concatenated channel-major buffer
    # (scalar-prefetched HW offsets) would remove that extra HBM pass, but needs
    # per-level channel-count padding — left out for simplicity.
    x_out, z = [], []
    for i, x in enumerate(xs):
        w, b = params[i]
        raw_perm, z_i = detect_level(
            x, w, b, anchors[i], strides[i], no, na,
            compute_dtype=compute_dtype, return_raw=return_raw,
            raw_dtype=raw_dtype)
        if return_raw:
            x_out.append(raw_perm)
        z.append(z_i)
    return jnp.concatenate(z, axis=1), (x_out if return_raw else None)


# ----------------------- pure-JAX reference (verification) -----------------------
def _ref_level(x_nchw, weight, bias, anchors_i, stride, no, na, nc, compute_dtype):
    bs, C, H, W = x_nchw.shape
    O = no * na
    # Same bf16 quantization of the matmul inputs as the kernel, f32 accumulate.
    xq = x_nchw.astype(compute_dtype).astype(jnp.float32)
    wq = weight.reshape(O, C).astype(compute_dtype).astype(jnp.float32)
    conv = jnp.einsum('oc,bchw->bohw', wq, xq) + bias.reshape(1, O, 1, 1)
    xp = conv.reshape(bs, na, no, H, W).transpose(0, 1, 3, 4, 2)      # (bs,na,H,W,no)
    yv, xv = jnp.meshgrid(jnp.arange(H), jnp.arange(W), indexing='ij')
    grid = jnp.stack((xv, yv), 2).reshape(1, 1, H, W, 2).astype(jnp.float32)
    ag = jnp.asarray(anchors_i, jnp.float32).reshape(1, na, 1, 1, 2)
    s = jax.nn.sigmoid(xp)
    xy = (s[..., 0:2] * 2.0 - 0.5 + grid) * stride
    wh = (s[..., 2:4] * 2.0) ** 2 * ag
    obj = s[..., 4:5]
    lms = [xp[..., 5 + 2 * j:7 + 2 * j] * ag + grid * stride for j in range(6)]
    cls = s[..., 17:17 + nc]
    dec = jnp.concatenate([xy, wh, obj] + lms + [cls], axis=-1)
    return xp, dec.reshape(bs, -1, no)


if __name__ == "__main__":
    # Small synthetic configuration consistent with the module:
    #   nc=2 -> no = nc + 5 + 12 = 19; 2 levels x 3 anchors -> na = 3, O = 57.
    nc = 2
    no = nc + 5 + 12
    anchors = np.array([[4, 5, 8, 10, 13, 16],
                        [23, 29, 43, 55, 73, 105]], np.float32).reshape(2, 3, 2)
    nl, na = anchors.shape[0], anchors.shape[1]
    ch = (4, 8)
    strides = (8.0, 16.0)
    O = no * na
    shapes = [(2, ch[0], 16, 16), (2, ch[1], 8, 8)]

    key = jax.random.PRNGKey(0)
    xs, params = [], []
    for i in range(nl):
        key, k1, k2, k3 = jax.random.split(key, 4)
        xs.append(jax.random.normal(k1, shapes[i], jnp.float32))
        w = 0.1 * jax.random.normal(k2, (O, ch[i], 1, 1), jnp.float32)
        b = 0.1 * jax.random.normal(k3, (O,), jnp.float32)
        params.append((w, b))

    # Full-fidelity path: returns (cat(z,1), x) exactly like the torch module.
    z_cat, x_out = detect_forward(xs, params, anchors, strides, no, na)
    jax.block_until_ready(z_cat)
    for x in x_out:
        jax.block_until_ready(x)

    # Inference-optimized path: skip the raw output (halves kernel write traffic).
    z_cat_fast, _ = detect_forward(xs, params, anchors, strides, no, na,
                                   return_raw=False)
    jax.block_until_ready(z_cat_fast)

    # Verify against the pure-JAX reference.
    z_ref_list, x_ref_list = [], []
    for i in range(nl):
        w, b = params[i]
        xr, zr = _ref_level(xs[i], w, b, anchors[i], strides[i], no, na, nc,
                            jnp.bfloat16)
        x_ref_list.append(xr)
        z_ref_list.append(zr)
    z_ref = jnp.concatenate(z_ref_list, axis=1)

    assert z_cat.shape == (2, na * (16 * 16 + 8 * 8), no)
    np.testing.assert_allclose(np.asarray(z_cat), np.asarray(z_ref),
                               rtol=2e-3, atol=2e-3)
    np.testing.assert_allclose(np.asarray(z_cat_fast), np.asarray(z_ref),
                               rtol=2e-3, atol=2e-3)
    for i in range(nl):
        np.testing.assert_allclose(np.asarray(x_out[i]), np.asarray(x_ref_list[i]),
                                    rtol=2e-3, atol=2e-3)

    print("KERNEL_OK")
</pallas_src>

<mosaic_0001>
module attributes {stable_mosaic.version = 11 : i64} {
  func.func @_detect_kernel(%arg0: i32, %arg1: i32, %arg2: memref<1x4x256xf32, #tpu.memory_space<vmem>>, %arg3: memref<57x4xbf16, #tpu.memory_space<vmem>>, %arg4: memref<57x7xf32, #tpu.memory_space<vmem>>, %arg5: memref<1x256xf32, #tpu.memory_space<vmem>>, %arg6: memref<1x256xf32, #tpu.memory_space<vmem>>, %arg7: memref<1x57x256xf32, #tpu.memory_space<vmem>>, %arg8: memref<1x57x256xf32, #tpu.memory_space<vmem>>) attributes {dimension_semantics = [#tpu.dimension_semantics<parallel>, #tpu.dimension_semantics<parallel>], iteration_bounds = array<i64: 2, 1>, scalar_prefetch = 0 : i64, scratch_operands = 0 : i64, tpu.core_type = #tpu.core_type<tc>, window_params = [{transform_indices = @transform_0, window_bounds = array<i64: 1, 4, 256>}, {pipeline_mode = #tpu.pipeline_mode<synchronous>, transform_indices = @transform_1, window_bounds = array<i64: 57, 4>}, {pipeline_mode = #tpu.pipeline_mode<synchronous>, transform_indices = @transform_2, window_bounds = array<i64: 57, 7>}, {transform_indices = @transform_3, window_bounds = array<i64: 1, 256>}, {transform_indices = @transform_4, window_bounds = array<i64: 1, 256>}, {transform_indices = @transform_5, window_bounds = array<i64: 1, 57, 256>}, {transform_indices = @transform_6, window_bounds = array<i64: 1, 57, 256>}]} {
    %c0 = arith.constant 0 : index
    %c0_0 = arith.constant 0 : index
    %c0_1 = arith.constant 0 : index
    %0 = vector.load %arg2[%c0, %c0_0, %c0_1] : memref<1x4x256xf32, #tpu.memory_space<vmem>>, vector<1x4x256xf32>
    %1 = vector.shape_cast %0 : vector<1x4x256xf32> to vector<4x256xf32>
    %2 = arith.truncf %1 : vector<4x256xf32> to vector<4x256xbf16>
    %c0_2 = arith.constant 0 : index
    %c0_3 = arith.constant 0 : index
    %3 = vector.load %arg3[%c0_2, %c0_3] : memref<57x4xbf16, #tpu.memory_space<vmem>>, vector<57x4xbf16>
    %cst = arith.constant dense<0.000000e+00> : vector<57x256xf32>
    %4 = tpu.matmul %3, %2, %cst {dimension_numbers = #tpu.dot_dimension_numbers<[1], [0], [0], [1], [0, 0, 1, 1], [], []>} : vector<57x4xbf16>, vector<4x256xbf16>, vector<57x256xf32> -> vector<57x256xf32>
    %c0_4 = arith.constant 0 : index
    %c0_5 = arith.constant 0 : index
    %5 = vector.load %arg4[%c0_4, %c0_5] : memref<57x7xf32, #tpu.memory_space<vmem>>, vector<57x7xf32>
    %6 = vector.extract_strided_slice %5 {offsets = [0, 0], sizes = [57, 1], strides = [1, 1]} : vector<57x7xf32> to vector<57x1xf32>
    %7 = vector.broadcast %6 : vector<57x1xf32> to vector<57x256xf32>
    %8 = arith.addf %4, %7 : vector<57x256xf32>
    %c0_6 = arith.constant 0 : index
    %c0_7 = arith.constant 0 : index
    %c0_8 = arith.constant 0 : index
    %9 = vector.load %arg7[%c0_6, %c0_7, %c0_8] : memref<1x57x256xf32, #tpu.memory_space<vmem>>, vector<1x57x256xf32>
    %10 = vector.shape_cast %9 : vector<1x57x256xf32> to vector<57x256xf32>
    %11 = vector.shape_cast %8 : vector<57x256xf32> to vector<1x57x256xf32>
    tpu.vector_store %arg7[%c0_6, %c0_7, %c0_8], %11 {strides = array<i32>} : memref<1x57x256xf32, #tpu.memory_space<vmem>>, vector<1x57x256xf32>,
    %cst_9 = arith.constant 5.000000e-01 : f32
    %12 = vector.broadcast %cst_9 : f32 to vector<57x256xf32>
    %13 = arith.mulf %12, %8 : vector<57x256xf32>
    %14 = math.tanh %13 : vector<57x256xf32>
    %cst_10 = arith.constant 5.000000e-01 : f32
    %15 = vector.broadcast %cst_10 : f32 to vector<57x256xf32>
    %16 = arith.mulf %15, %14 : vector<57x256xf32>
    %cst_11 = arith.constant 5.000000e-01 : f32
    %17 = vector.broadcast %cst_11 : f32 to vector<57x256xf32>
    %18 = arith.addf %16, %17 : vector<57x256xf32>
    %19 = vector.extract_strided_slice %5 {offsets = [0, 4], sizes = [57, 1], strides = [1, 1]} : vector<57x7xf32> to vector<57x1xf32>
    %c0_12 = arith.constant 0 : index
    %c0_13 = arith.constant 0 : index
    %20 = vector.load %arg5[%c0_12, %c0_13] : memref<1x256xf32, #tpu.memory_space<vmem>>, vector<1x256xf32>
    %21 = vector.broadcast %19 : vector<57x1xf32> to vector<57x256xf32>
    %22 = vector.broadcast %20 : vector<1x256xf32> to vector<57x256xf32>
    %23 = arith.mulf %21, %22 : vector<57x256xf32>
    %24 = vector.extract_strided_slice %5 {offsets = [0, 5], sizes = [57, 1], strides = [1, 1]} : vector<57x7xf32> to vector<57x1xf32>
    %c0_14 = arith.constant 0 : index
    %c0_15 = arith.constant 0 : index
    %25 = vector.load %arg6[%c0_14, %c0_15] : memref<1x256xf32, #tpu.memory_space<vmem>>, vector<1x256xf32>
    %26 = vector.broadcast %24 : vector<57x1xf32> to vector<57x256xf32>
    %27 = vector.broadcast %25 : vector<1x256xf32> to vector<57x256xf32>
    %28 = arith.mulf %26, %27 : vector<57x256xf32>
    %29 = arith.addf %23, %28 : vector<57x256xf32>
    %30 = vector.extract_strided_slice %5 {offsets = [0, 6], sizes = [57, 1], strides = [1, 1]} : vector<57x7xf32> to vector<57x1xf32>
    %31 = vector.broadcast %30 : vector<57x1xf32> to vector<57x256xf32>
    %32 = arith.addf %29, %31 : vector<57x256xf32>
    %33 = vector.extract_strided_slice %5 {offsets = [0, 1], sizes = [57, 1], strides = [1, 1]} : vector<57x7xf32> to vector<57x1xf32>
    %34 = vector.broadcast %33 : vector<57x1xf32> to vector<57x256xf32>
    %35 = arith.mulf %34, %18 : vector<57x256xf32>
    %36 = vector.extract_strided_slice %5 {offsets = [0, 2], sizes = [57, 1], strides = [1, 1]} : vector<57x7xf32> to vector<57x1xf32>
    %37 = vector.broadcast %36 : vector<57x1xf32> to vector<57x256xf32>
    %38 = arith.addf %35, %37 : vector<57x256xf32>
    %39 = arith.mulf %18, %38 : vector<57x256xf32>
    %40 = vector.extract_strided_slice %5 {offsets = [0, 3], sizes = [57, 1], strides = [1, 1]} : vector<57x7xf32> to vector<57x1xf32>
    %41 = vector.broadcast %40 : vector<57x1xf32> to vector<57x256xf32>
    %42 = arith.mulf %41, %8 : vector<57x256xf32>
    %43 = arith.addf %39, %42 : vector<57x256xf32>
    %44 = arith.addf %43, %32 : vector<57x256xf32>
    %c0_16 = arith.constant 0 : index
    %c0_17 = arith.constant 0 : index
    %c0_18 = arith.constant 0 : index
    %45 = vector.load %arg8[%c0_16, %c0_17, %c0_18] : memref<1x57x256xf32, #tpu.memory_space<vmem>>, vector<1x57x256xf32>
    %46 = vector.shape_cast %45 : vector<1x57x256xf32> to vector<57x256xf32>
    %47 = vector.shape_cast %44 : vector<57x256xf32> to vector<1x57x256xf32>
    tpu.vector_store %arg8[%c0_16, %c0_17, %c0_18], %47 {strides = array<i32>} : memref<1x57x256xf32, #tpu.memory_space<vmem>>, vector<1x57x256xf32>,
    return
  }
  func.func @transform_0(%arg0: i32, %arg1: i32) -> (i32, i32, i32) {
    %c0_i32 = arith.constant 0 : i32
    %c0_i32_0 = arith.constant 0 : i32
    return %arg0, %c0_i32, %arg1 : i32, i32, i32
  }
  func.func @transform_1(%arg0: i32, %arg1: i32) -> (i32, i32) {
    %c0_i32 = arith.constant 0 : i32
    %c0_i32_0 = arith.constant 0 : i32
    %c0_i32_1 = arith.constant 0 : i32
    return %c0_i32, %c0_i32_0 : i32, i32
  }
  func.func @transform_2(%arg0: i32, %arg1: i32) -> (i32, i32) {
    %c0_i32 = arith.constant 0 : i32
    %c0_i32_0 = arith.constant 0 : i32
    %c0_i32_1 = arith.constant 0 : i32
    return %c0_i32, %c0_i32_0 : i32, i32
  }
  func.func @transform_3(%arg0: i32, %arg1: i32) -> (i32, i32) {
    %c0_i32 = arith.constant 0 : i32
    %c0_i32_0 = arith.constant 0 : i32
    return %c0_i32, %arg1 : i32, i32
  }
  func.func @transform_4(%arg0: i32, %arg1: i32) -> (i32, i32) {
    %c0_i32 = arith.constant 0 : i32
    %c0_i32_0 = arith.constant 0 : i32
    return %c0_i32, %arg1 : i32, i32
  }
  func.func @transform_5(%arg0: i32, %arg1: i32) -> (i32, i32, i32) {
    %c0_i32 = arith.constant 0 : i32
    %c0_i32_0 = arith.constant 0 : i32
    return %arg0, %c0_i32, %arg1 : i32, i32, i32
  }
  func.func @transform_6(%arg0: i32, %arg1: i32) -> (i32, i32, i32) {
    %c0_i32 = arith.constant 0 : i32
    %c0_i32_0 = arith.constant 0 : i32
    return %arg0, %c0_i32, %arg1 : i32, i32, i32
  }
}

</mosaic_0001>

<llo_original>
// kernel: tpu_custom_call.1
$region0: #{tpu_custom_call.1}
  #allocation0 [shape = 'u32[]', space=smem, size = 0x4, offset = 0x4, fixed_abs, tag = 'smem constant byte address 0x4 - core index']
  #allocation1 [shape = 'u32[72,128]{1,0:T(1,128)}', space=vmem, size = 0x9000, scoped, tag = 'internal scratch']
  %s0 = inlined_call_operand.vmem [shape: f32[2,4,256], index: 0, kind: input, shape index: {}]
  %s1 = inlined_call_operand.vmem [shape: bf16[57,4], index: 1, kind: input, shape index: {}]
  %s2 = inlined_call_operand.vmem [shape: f32[57,7], index: 2, kind: input, shape index: {}]
  %s3 = inlined_call_operand.vmem [shape: f32[1,256], index: 3, kind: input, shape index: {}]
  %s4 = inlined_call_operand.vmem [shape: f32[1,256], index: 4, kind: input, shape index: {}]
  %s5 = inlined_call_operand.vmem [shape: f32[2,57,256], index: 5, kind: output, shape index: {0}]
  %s6 = inlined_call_operand.vmem [shape: f32[2,57,256], index: 6, kind: output, shape index: {1}]
  %7 = xla_tuple %s5, %s6
  %s8 = sld [smem:[#allocation0]]
  $region61: #{tpu_custom_call.1} parent=0
    _
  %s10 = ssub.s32 1, %s8
  %s11 = scalar_select 0, %s10, %s8
  loop: start=0, step=1, limit=4
  $region2: #{tpu_custom_call.1} parent=0 // loop_pre_header
    _
  $region3: #{tpu_custom_call.1} parent=0 // loop_header
    %s13 = sphi 0, %s17
    %p14 = scmp.ge.s32.totalorder %s13, 4
    %s20 = sphi 0, %s32
    %s21 = sphi 0, %s28
    %s22 = sphi 0, %s20
    %s23 = sphi 0, %s21
    %s24 = sphi 0, %s22
    %s25 = sphi 0, %s23
    %s37 = sphi 0, %s39
    %s40 = sphi 0, %s37
    %s41 = sphi 0, %s40
    %s57 = sphi 0, %s41
    %s61 = sphi 0, %s61
    %s63 = sphi 0, %s61
    %s64 = sphi 0, %s63
    %s78 = sphi 0, %s64
    %s82 = sphi 0, %s82
    %s84 = sphi 0, %s82
    %s85 = sphi 0, %s84
    %s99 = sphi 0, %s85
    %s105 = sphi 0, %s107
    %s108 = sphi 0, %s105
    %s109 = sphi 0, %s108
    %s125 = sphi 0, %s109
    %s131 = sphi 0, %s133
    %s134 = sphi 0, %s131
    %s135 = sphi 0, %s134
    %s151 = sphi 0, %s135
    %s159 = sphi 0, %s161
    %s162 = sphi 0, %s159
    %s163 = sphi 0, %s162
    %s179 = sphi 0, %s163
    %s187 = sphi 0, %s189
    %s190 = sphi 0, %s187
    %s191 = sphi 0, %s190
    %s207 = sphi 0, %s191
  $region4: #{tpu_custom_call.1} parent=0 // loop_header_branch
    %16 = sbr.rel (%p14) target = $region8
  $region5: #{tpu_custom_call.1} parent=0 // loop_body
    %s18 = ssub.s32 %s13, 1
    %s19 = ssub.s32 %s13, 2
    %s26 = sadd.s32 1, %s21
    %p27 = scmp.ge.s32.totalorder %s26, 1
    %s28 = scalar_select %p27, 0, %s26
    %s29 = sadd.s32 1, %s20
    %s30 = scalar_select %p27, %s29, %s20
    %p31 = scmp.ge.s32.totalorder %s30, 2
    %s32 = scalar_select %p31, 0, %s30
    %s33 = ssub.s32 %s20, %s32
    %s34 = ssub.s32 %s21, %s28
    %s35 = sor.u32 %s33, %s34
    %p36 = scmp.eq.s32.totalorder %s35, 0
    %s38 = sadd.s32 %s37, 1
    %s39 = scalar_select %p36, %s37, %s38
    %p42 = pneg %p36
    %p43 = scmp.eq.s32.totalorder %s13, 1
    %p44 = por %p42, %p43
    %p45 = scmp.ne.s32.totalorder %s37, %s40
    %p46 = scmp.eq.s32.totalorder %s13, 0
    %p47 = por %p45, %p46
    %p48 = scmp.ne.s32.totalorder %s37, %s40
    %p49 = scmp.eq.s32.totalorder %s18, 1
    %p50 = por %p48, %p49
    %p51 = scmp.ne.s32.totalorder %s40, %s41
    %p52 = scmp.eq.s32.totalorder %s18, 0
    %p53 = por %p51, %p52
    %p54 = scmp.ne.s32.totalorder %s40, %s41
    %p55 = scmp.eq.s32.totalorder %s19, 1
    %p56 = por %p54, %p55
    %p58 = scmp.ne.s32.totalorder %s41, %s57
    %p59 = scmp.eq.s32.totalorder %s19, 0
    %p60 = por %p58, %p59
    %s62 = sadd.s32 %s61, 1
    %p65 = scmp.eq.s32.totalorder %s13, 1
    %p66 = scmp.ne.s32.totalorder %s61, %s63
    %p67 = scmp.eq.s32.totalorder %s13, 0
    %p68 = por %p66, %p67
    %p69 = scmp.ne.s32.totalorder %s61, %s63
    %p70 = scmp.eq.s32.totalorder %s18, 1
    %p71 = por %p69, %p70
    %p72 = scmp.ne.s32.totalorder %s63, %s64
    %p73 = scmp.eq.s32.totalorder %s18, 0
    %p74 = por %p72, %p73
    %p75 = scmp.ne.s32.totalorder %s63, %s64
    %p76 = scmp.eq.s32.totalorder %s19, 1
    %p77 = por %p75, %p76
    %p79 = scmp.ne.s32.totalorder %s64, %s78
    %p80 = scmp.eq.s32.totalorder %s19, 0
    %p81 = por %p79, %p80
    %s83 = sadd.s32 %s82, 1
    %p86 = scmp.eq.s32.totalorder %s13, 1
    %p87 = scmp.ne.s32.totalorder %s82, %s84
    %p88 = scmp.eq.s32.totalorder %s13, 0
    %p89 = por %p87, %p88
    %p90 = scmp.ne.s32.totalorder %s82, %s84
    %p91 = scmp.eq.s32.totalorder %s18, 1
    %p92 = por %p90, %p91
    %p93 = scmp.ne.s32.totalorder %s84, %s85
    %p94 = scmp.eq.s32.totalorder %s18, 0
    %p95 = por %p93, %p94
    %p96 = scmp.ne.s32.totalorder %s84, %s85
    %p97 = scmp.eq.s32.totalorder %s19, 1
    %p98 = por %p96, %p97
    %p100 = scmp.ne.s32.totalorder %s85, %s99
    %p101 = scmp.eq.s32.totalorder %s19, 0
    %p102 = por %p100, %p101
    %s103 = ssub.s32 %s21, %s28
    %p104 = scmp.eq.s32.totalorder %s103, 0
    %s106 = sadd.s32 %s105, 1
    %s107 = scalar_select %p104, %s105, %s106
    %p110 = pneg %p104
    %p111 = scmp.eq.s32.totalorder %s13, 1
    %p112 = por %p110, %p111
    %p113 = scmp.ne.s32.totalorder %s105, %s108
    %p114 = scmp.eq.s32.totalorder %s13, 0
    %p115 = por %p113, %p114
    %p116 = scmp.ne.s32.totalorder %s105, %s108
    %p117 = scmp.eq.s32.totalorder %s18, 1
    %p118 = por %p116, %p117
    %p119 = scmp.ne.s32.totalorder %s108, %s109
    %p120 = scmp.eq.s32.totalorder %s18, 0
    %p121 = por %p119, %p120
    %p122 = scmp.ne.s32.totalorder %s108, %s109
    %p123 = scmp.eq.s32.totalorder %s19, 1
    %p124 = por %p122, %p123
    %p126 = scmp.ne.s32.totalorder %s109, %s125
    %p127 = scmp.eq.s32.totalorder %s19, 0
    %p128 = por %p126, %p127
    %s129 = ssub.s32 %s21, %s28
    %p130 = scmp.eq.s32.totalorder %s129, 0
    %s132 = sadd.s32 %s131, 1
    %s133 = scalar_select %p130, %s131, %s132
    %p136 = pneg %p130
    %p137 = scmp.eq.s32.totalorder %s13, 1
    %p138 = por %p136, %p137
    %p139 = scmp.ne.s32.totalorder %s131, %s134
    %p140 = scmp.eq.s32.totalorder %s13, 0
    %p141 = por %p139, %p140
    %p142 = scmp.ne.s32.totalorder %s131, %s134
    %p143 = scmp.eq.s32.totalorder %s18, 1
    %p144 = por %p142, %p143
    %p145 = scmp.ne.s32.totalorder %s134, %s135
    %p146 = scmp.eq.s32.totalorder %s18, 0
    %p147 = por %p145, %p146
    %p148 = scmp.ne.s32.totalorder %s134, %s135
    %p149 = scmp.eq.s32.totalorder %s19, 1
    %p150 = por %p148, %p149
    %p152 = scmp.ne.s32.totalorder %s135, %s151
    %p153 = scmp.eq.s32.totalorder %s19, 0
    %p154 = por %p152, %p153
    %s155 = ssub.s32 %s20, %s32
    %s156 = ssub.s32 %s21, %s28
    %s157 = sor.u32 %s155, %s156
    %p158 = scmp.eq.s32.totalorder %s157, 0
    %s160 = sadd.s32 %s159, 1
    %s161 = scalar_select %p158, %s159, %s160
    %p164 = pneg %p158
    %p165 = scmp.eq.s32.totalorder %s13, 1
    %p166 = por %p164, %p165
    %p167 = scmp.ne.s32.totalorder %s159, %s162
    %p168 = scmp.eq.s32.totalorder %s13, 0
    %p169 = por %p167, %p168
    %p170 = scmp.ne.s32.totalorder %s159, %s162
    %p171 = scmp.eq.s32.totalorder %s18, 1
    %p172 = por %p170, %p171
    %p173 = scmp.ne.s32.totalorder %s162, %s163
    %p174 = scmp.eq.s32.totalorder %s18, 0
    %p175 = por %p173, %p174
    %p176 = scmp.ne.s32.totalorder %s162, %s163
    %p177 = scmp.eq.s32.totalorder %s19, 1
    %p178 = por %p176, %p177
    %p180 = scmp.ne.s32.totalorder %s163, %s179
    %p181 = scmp.eq.s32.totalorder %s19, 0
    %p182 = por %p180, %p181
    %s183 = ssub.s32 %s20, %s32
    %s184 = ssub.s32 %s21, %s28
    %s185 = sor.u32 %s183, %s184
    %p186 = scmp.eq.s32.totalorder %s185, 0
    %s188 = sadd.s32 %s187, 1
    %s189 = scalar_select %p186, %s187, %s188
    %p192 = pneg %p186
    %p193 = scmp.eq.s32.totalorder %s13, 1
    %p194 = por %p192, %p193
    %p195 = scmp.ne.s32.totalorder %s187, %s190
    %p196 = scmp.eq.s32.totalorder %s13, 0
    %p197 = por %p195, %p196
    %p198 = scmp.ne.s32.totalorder %s187, %s190
    %p199 = scmp.eq.s32.totalorder %s18, 1
    %p200 = por %p198, %p199
    %p201 = scmp.ne.s32.totalorder %s190, %s191
    %p202 = scmp.eq.s32.totalorder %s18, 0
    %p203 = por %p201, %p202
    %p204 = scmp.ne.s32.totalorder %s190, %s191
    %p205 = scmp.eq.s32.totalorder %s19, 1
    %p206 = por %p204, %p205
    %p208 = scmp.ne.s32.totalorder %s191, %s207
    %p209 = scmp.eq.s32.totalorder %s19, 0
    %p210 = por %p208, %p209
    %p211 = scmp.le.s32.totalorder 1, %s13
    %p212 = scmp.lt.s32.totalorder %s13, 3
    %p213 = pnand %p211, %p212
    %p214 = pneg %p213
    // Predicated region
    $region9: #{tpu_custom_call.1} parent=5 // pred_check
      _
    $region10: #{tpu_custom_call.1} parent=5 // pred_check_branch
      %216 = sbr.rel (%p213) target = $region12
    $region11: #{tpu_custom_call.1} parent=5 // pred_region
      %s217 = ssub.s32 %s13, 1
      // Predicated region
      $region13: #{tpu_custom_call.1} parent=11 // pred_check
        %p218 = pneg %p74
      $region14: #{tpu_custom_call.1} parent=11 // pred_check_branch
        %220 = sbr.rel (%p218) target = $region16
      $region15: #{tpu_custom_call.1} parent=11 // pred_region
        _
      $region16: #{tpu_custom_call.1} parent=11 // pred_fallthru
        _
      // Predicated region
      $region17: #{tpu_custom_call.1} parent=11 // pred_check
        %p221 = pneg %p95
      $region18: #{tpu_custom_call.1} parent=11 // pred_check_branch
        %223 = sbr.rel (%p221) target = $region20
      $region19: #{tpu_custom_call.1} parent=11 // pred_region
        _
      $region20: #{tpu_custom_call.1} parent=11 // pred_fallthru
        _
      // Predicated region
      $region21: #{tpu_custom_call.1} parent=11 // pred_check
        %p224 = pneg %p121
      $region22: #{tpu_custom_call.1} parent=11 // pred_check_branch
        %226 = sbr.rel (%p224) target = $region24
      $region23: #{tpu_custom_call.1} parent=11 // pred_region
        %s227 = smul.u32 2, %s23
        %p228 = scmp.lt.s32.totalorder %s227, 1
        %s229 = scalar_select %p228, %s227, 1
        %s230 = scalar_lea.vmem %s3, %s229
        %s231 = smul.u32 2, %s23
      $region24: #{tpu_custom_call.1} parent=11 // pred_fallthru
        _
      // Predicated region
      $region25: #{tpu_custom_call.1} parent=11 // pred_check
        %p232 = pneg %p147
      $region26: #{tpu_custom_call.1} parent=11 // pred_check_branch
        %234 = sbr.rel (%p232) target = $region28
      $region27: #{tpu_custom_call.1} parent=11 // pred_region
        %s235 = smul.u32 2, %s23
        %p236 = scmp.lt.s32.totalorder %s235, 1
        %s237 = scalar_select %p236, %s235, 1
        %s238 = scalar_lea.vmem %s4, %s237
        %s239 = smul.u32 2, %s23
      $region28: #{tpu_custom_call.1} parent=11 // pred_fallthru
        _
    $region12: #{tpu_custom_call.1} parent=5 // pred_fallthru
      _
    %p240 = scmp.lt.s32.totalorder %s13, 2
    // Predicated region
    $region29: #{tpu_custom_call.1} parent=5 // pred_check
      %p241 = pneg %p240
    $region30: #{tpu_custom_call.1} parent=5 // pred_check_branch
      %243 = sbr.rel (%p241) target = $region32
    $region31: #{tpu_custom_call.1} parent=5 // pred_region
      // Predicated region
      $region33: #{tpu_custom_call.1} parent=31 // pred_check
        %p244 = pneg %p47
      $region34: #{tpu_custom_call.1} parent=31 // pred_check_branch
        %246 = sbr.rel (%p244) target = $region36
      $region35: #{tpu_custom_call.1} parent=31 // pred_region
        %s247 = smul.u32 2, %s21
        %p248 = scmp.lt.s32.totalorder %s20, 1
        %s249 = scalar_select %p248, %s20, 1
        %p250 = scmp.lt.s32.totalorder %s247, 1
        %s251 = scalar_select %p250, %s247, 1
        %s252 = smul.addr %s249, 2
        %s253 = sadd.s32 %s251, %s252
        %s254 = smul.addr %s253, 4
        %s255 = scalar_lea.vmem %s0, %s254
        %s256 = smul.u32 2, %s21
      $region36: #{tpu_custom_call.1} parent=31 // pred_fallthru
        _
    $region32: #{tpu_custom_call.1} parent=5 // pred_fallthru
      _
    %p257 = scmp.le.s32.totalorder 1, %s13
    %p258 = scmp.lt.s32.totalorder %s13, 3
    %p259 = pnand %p257, %p258
    %p260 = pneg %p259
    // Predicated region
    $region37: #{tpu_custom_call.1} parent=5 // pred_check
      _
    $region38: #{tpu_custom_call.1} parent=5 // pred_check_branch
      %262 = sbr.rel (%p259) target = $region40
    $region39: #{tpu_custom_call.1} parent=5 // pred_region
      %s263 = ssub.s32 %s13, 1
      %s264 = smul.u32 2, %s23
      %p265 = scmp.lt.s32.totalorder %s22, 1
      %s266 = scalar_select %p265, %s22, 1
      %p267 = scmp.lt.s32.totalorder %s264, 1
      %s268 = scalar_select %p267, %s264, 1
      %s269 = smul.addr %s266, 2
      %s270 = sadd.s32 %s268, %s269
      %s271 = smul.addr %s270, 4
      %s272 = scalar_lea.vmem %s0, %s271
      %p273 = pneg %p53
      %p274 = pneg %p50
      %p275 = pneg %p74
      %p276 = pneg %p71
      %p277 = pneg %p95
      %p278 = pneg %p92
      %s279 = smul.u32 2, %s23
      %p280 = scmp.lt.s32.totalorder %s279, 1
      %s281 = scalar_select %p280, %s279, 1
      %s282 = scalar_lea.vmem %s3, %s281
      %p283 = pneg %p121
      %p284 = pneg %p118
      %s285 = smul.u32 2, %s23
      %p286 = scmp.lt.s32.totalorder %s285, 1
      %s287 = scalar_select %p286, %s285, 1
      %s288 = scalar_lea.vmem %s4, %s287
      %p289 = pneg %p147
      %p290 = pneg %p144
      %p291 = pneg %p175
      %p292 = pneg %p172
      %s293 = smul.u32 2, %s23
      %p294 = scmp.lt.s32.totalorder %s22, 1
      %s295 = scalar_select %p294, %s22, 1
      %p296 = scmp.lt.s32.totalorder %s293, 1
      %s297 = scalar_select %p296, %s293, 1
      %s298 = smul.addr %s295, 16
      %s299 = sadd.s32 %s297, %s298
      %s300 = smul.addr %s299, 8
      %s301 = scalar_lea.vmem %s5, %s300
      %p302 = pneg %p203
      %p303 = pneg %p200
      %s304 = smul.u32 2, %s23
      %p305 = scmp.lt.s32.totalorder %s22, 1
      %s306 = scalar_select %p305, %s22, 1
      %p307 = scmp.lt.s32.totalorder %s304, 1
      %s308 = scalar_select %p307, %s304, 1
      %s309 = smul.addr %s306, 16
      %s310 = sadd.s32 %s308, %s309
      %s311 = smul.addr %s310, 8
      %s312 = scalar_lea.vmem %s6, %s311
      %s313 = smul.u32 2, %s23
      %p314 = scmp.lt.s32.totalorder %s22, 1
      %s315 = scalar_select %p314, %s22, 1
      %p316 = scmp.lt.s32.totalorder %s313, 1
      %s317 = scalar_select %p316, %s313, 1
      %s318 = smul.addr %s315, 2
      %s319 = sadd.s32 %s317, %s318
      %s320 = smul.addr %s319, 4
      %s321 = scalar_lea.vmem %s0, %s320
      %s322 = smul.u32 2, %s23
      %s323 = smul.u32 2, %s23
      %p324 = scmp.lt.s32.totalorder %s323, 1
      %s325 = scalar_select %p324, %s323, 1
      %s326 = scalar_lea.vmem %s3, %s325
      %s327 = smul.u32 2, %s23
      %s328 = smul.u32 2, %s23
      %p329 = scmp.lt.s32.totalorder %s328, 1
      %s330 = scalar_select %p329, %s328, 1
      %s331 = scalar_lea.vmem %s4, %s330
      %s332 = smul.u32 2, %s23
      %s333 = smul.u32 2, %s23
      %p334 = scmp.lt.s32.totalorder %s22, 1
      %s335 = scalar_select %p334, %s22, 1
      %p336 = scmp.lt.s32.totalorder %s333, 1
      %s337 = scalar_select %p336, %s333, 1
      %s338 = smul.addr %s335, 16
      %s339 = sadd.s32 %s337, %s338
      %s340 = smul.addr %s339, 8
      %s341 = scalar_lea.vmem %s5, %s340
      %s342 = smul.u32 2, %s23
      %s343 = smul.u32 2, %s23
      %p344 = scmp.lt.s32.totalorder %s22, 1
      %s345 = scalar_select %p344, %s22, 1
      %p346 = scmp.lt.s32.totalorder %s343, 1
      %s347 = scalar_select %p346, %s343, 1
      %s348 = smul.addr %s345, 16
      %s349 = sadd.s32 %s347, %s348
      %s350 = smul.addr %s349, 8
      %s351 = scalar_lea.vmem %s6, %s350
      %s352 = smul.u32 2, %s23
      %v354 = vld [vmem:[%s321] sm:$0xff]
      %356 = vst [vmem:[#allocation1] ss:$2 sm:$0xff] %v354
      %v357 = vld.sshfl [vmem:[#allocation1] sm:$0xff pattern:$0x75316420]
      %v358 = vld.sshfl [vmem:[#allocation1 + $0x8] sm:$0xff pattern:$0x75316420]
      %v361 = vpack.c.bf16 %v357, %v357
      %v362 = vpack.c.bf16 %v358, %v358
      %v363 = vld [vmem:[%s1] sm:$0xf]
      %v364 = vld [vmem:[%s1 + $0x4] sm:$0xf]
      %v365 = vld [vmem:[%s1 + $0x8] sm:$0xf]
      %v366 = vld [vmem:[%s1 + $0xc] sm:$0xf]
      %v367 = vld [vmem:[%s1 + $0x10] sm:$0xf]
      %v368 = vld [vmem:[%s1 + $0x14] sm:$0xf]
      %v369 = vld [vmem:[%s1 + $0x18] sm:$0xf]
      %v370 = vld [vmem:[%s1 + $0x1c] sm:$0x1]
      %v371 = vld [vmem:[%s2] sm:$0xff]
      %v372 = vld [vmem:[%s2 + $0x8] sm:$0xff]
      %v373 = vld [vmem:[%s2 + $0x10] sm:$0xff]
      %v374 = vld [vmem:[%s2 + $0x18] sm:$0xff]
      %v375 = vld [vmem:[%s2 + $0x20] sm:$0xff]
      %v376 = vld [vmem:[%s2 + $0x28] sm:$0xff]
      %v377 = vld [vmem:[%s2 + $0x30] sm:$0xff]
      %v378 = vld [vmem:[%s2 + $0x38] sm:$0x1]
      %380 = vset.pattern.permute.xlu0 0
      %381 = vperm.xlu0 %380, %v371
      %v382 = vpop.permute.xlu0 %381
      %385 = vset.pattern.permute.xlu0 0
      %386 = vperm.xlu0 %385, %v372
      %v387 = vpop.permute.xlu0 %386
      %390 = vset.pattern.permute.xlu0 0
      %391 = vperm.xlu0 %390, %v373
      %v392 = vpop.permute.xlu0 %391
      %395 = vset.pattern.permute.xlu0 0
      %396 = vperm.xlu0 %395, %v374
      %v397 = vpop.permute.xlu0 %396
      %400 = vset.pattern.permute.xlu0 0
      %401 = vperm.xlu0 %400, %v375
      %v402 = vpop.permute.xlu0 %401
      %405 = vset.pattern.permute.xlu0 0
      %406 = vperm.xlu0 %405, %v376
      %v407 = vpop.permute.xlu0 %406
      %410 = vset.pattern.permute.xlu0 0
      %411 = vperm.xlu0 %410, %v377
      %v412 = vpop.permute.xlu0 %411
      %415 = vset.pattern.permute.xlu0 0
      %416 = vperm.xlu0 %415, %v378
      %v417 = vpop.permute.xlu0 %416
      %v427 = vunpack.c.l.b16 %v363
      %v428 = vunpack.c.l.b16 %v364
      %v429 = vunpack.c.l.b16 %v365
      %v430 = vunpack.c.l.b16 %v366
      %v431 = vunpack.c.l.b16 %v367
      %v432 = vunpack.c.l.b16 %v368
      %v433 = vunpack.c.l.b16 %v369
      %v434 = vunpack.c.l.b16 %v370
      %v435 = vpack.c.b16 %v428, %v427
      %v436 = vpack.c.b16 %v430, %v429
      %v437 = vpack.c.b16 %v432, %v431
      %v438 = vpack.c.b16 %v434, %v433
      %vm439 = vcmask 31744
      %v441 = vsel %vm439, %v435, 0
      %v444 = vsel %vm439, %v436, 0
      %v447 = vsel %vm439, %v437, 0
      %v450 = vsel %vm439, %v438, 0
      %vm452 = vcmask 1041408
      %v454 = vsel %vm452, %v361, 0
      %v457 = vsel %vm452, %v362, 0
      %459 = vmatpush.bf16.msra.mxu0 0
      %460 = vmatpush.bf16.msra.mxu0 0
      %461 = vmatpush.bf16.msra.mxu0 0
      %462 = vmatpush.bf16.msra.mxu0 0
      %463 = vmatpush.bf16.msra.mxu0 0
      %464 = vmatpush.bf16.msra.mxu0 0
      %465 = vmatpush.bf16.msra.mxu0 0
      %466 = vmatpush.bf16.msra.mxu0 %v454
      %467 = vmatmul.bf16.gmra.mxu0 %v441
      %v468 = vpop.f32.mrf.mxu0
      %v469 = vadd.f32 %v382, %v468
      %v470 = vpop.f32.mrf.mxu0
      %v471 = vadd.f32 %v387, %v470
      %472 = vmatmul.bf16.gmra.mxu0 %v444
      %v473 = vpop.f32.mrf.mxu0
      %v474 = vadd.f32 %v392, %v473
      %v475 = vpop.f32.mrf.mxu0
      %v476 = vadd.f32 %v397, %v475
      %477 = vmatmul.bf16.gmra.mxu0 %v447
      %v478 = vpop.f32.mrf.mxu0
      %v479 = vadd.f32 %v402, %v478
      %v480 = vpop.f32.mrf.mxu0
      %v481 = vadd.f32 %v407, %v480
      %482 = vmatmul.bf16.gmra.mxu0 %v450
      %v483 = vpop.f32.mrf.mxu0
      %v484 = vadd.f32 %v412, %v483
      %v485 = vpop.f32.mrf.mxu0
      %v486 = vadd.f32 %v417, %v485
      %487 = vdwg.mxu0
      %488 = vmatpush.bf16.msra.mxu0 0
      %489 = vmatpush.bf16.msra.mxu0 0
      %490 = vmatpush.bf16.msra.mxu0 0
      %491 = vmatpush.bf16.msra.mxu0 0
      %492 = vmatpush.bf16.msra.mxu0 0
      %493 = vmatpush.bf16.msra.mxu0 0
      %494 = vmatpush.bf16.msra.mxu0 0
      %495 = vmatpush.bf16.msra.mxu0 %v457
      %496 = vmatmul.bf16.gmra.mxu0 %v441
      %v497 = vpop.f32.mrf.mxu0
      %v498 = vadd.f32 %v382, %v497
      %v499 = vpop.f32.mrf.mxu0
      %v500 = vadd.f32 %v387, %v499
      %501 = vmatmul.bf16.gmra.mxu0 %v444
      %v502 = vpop.f32.mrf.mxu0
      %v503 = vadd.f32 %v392, %v502
      %v504 = vpop.f32.mrf.mxu0
      %v505 = vadd.f32 %v397, %v504
      %506 = vmatmul.bf16.gmra.mxu0 %v447
      %v507 = vpop.f32.mrf.mxu0
      %v508 = vadd.f32 %v402, %v507
      %v509 = vpop.f32.mrf.mxu0
      %v510 = vadd.f32 %v407, %v509
      %511 = vmatmul.bf16.gmra.mxu0 %v450
      %v512 = vpop.f32.mrf.mxu0
      %v513 = vadd.f32 %v412, %v512
      %v514 = vpop.f32.mrf.mxu0
      %v515 = vadd.f32 %v417, %v514
      %516 = vdwg.mxu0
      %517 = vst [vmem:[%s341] sm:$0xff] %v469
      %518 = vst [vmem:[%s341 + $0x8] sm:$0xff] %v498
      %519 = vst [vmem:[%s341 + $0x10] sm:$0xff] %v471
      %520 = vst [vmem:[%s341 + $0x18] sm:$0xff] %v500
      %521 = vst [vmem:[%s341 + $0x20] sm:$0xff] %v474
      %522 = vst [vmem:[%s341 + $0x28] sm:$0xff] %v503
      %523 = vst [vmem:[%s341 + $0x30] sm:$0xff] %v476
      %524 = vst [vmem:[%s341 + $0x38] sm:$0xff] %v505
      %525 = vst [vmem:[%s341 + $0x40] sm:$0xff] %v479
      %526 = vst [vmem:[%s341 + $0x48] sm:$0xff] %v508
      %527 = vst [vmem:[%s341 + $0x50] sm:$0xff] %v481
      %528 = vst [vmem:[%s341 + $0x58] sm:$0xff] %v510
      %529 = vst [vmem:[%s341 + $0x60] sm:$0xff] %v484
      %530 = vst [vmem:[%s341 + $0x68] sm:$0xff] %v513
      %531 = vst [vmem:[%s341 + $0x70] sm:$0x1] %v486
      %532 = vst [vmem:[%s341 + $0x78] sm:$0x1] %v515
      %v533 = vmul.f32 %v469, 0.5
      %v534 = vmul.f32 %v498, 0.5
      %v535 = vmul.f32 %v471, 0.5
      %v536 = vmul.f32 %v500, 0.5
      %v537 = vmul.f32 %v474, 0.5
      %v538 = vmul.f32 %v503, 0.5
      %v539 = vmul.f32 %v476, 0.5
      %v540 = vmul.f32 %v505, 0.5
      %v541 = vmul.f32 %v479, 0.5
      %v542 = vmul.f32 %v508, 0.5
      %v543 = vmul.f32 %v481, 0.5
      %v544 = vmul.f32 %v510, 0.5
      %v545 = vmul.f32 %v484, 0.5
      %v546 = vmul.f32 %v513, 0.5
      %v547 = vmul.f32 %v486, 0.5
      %v548 = vmul.f32 %v515, 0.5
      %v549 = vtanh.pop %v533
      %v550 = vtanh.pop %v534
      %v551 = vtanh.pop %v535
      %v552 = vtanh.pop %v536
      %v553 = vtanh.pop %v537
      %v554 = vtanh.pop %v538
      %v555 = vtanh.pop %v539
      %v556 = vtanh.pop %v540
      %v557 = vtanh.pop %v541
      %v558 = vtanh.pop %v542
      %v559 = vtanh.pop %v543
      %v560 = vtanh.pop %v544
      %v561 = vtanh.pop %v545
      %v562 = vtanh.pop %v546
      %v563 = vtanh.pop %v547
      %v564 = vtanh.pop %v548
      %v565 = vmul.f32 %v549, 0.5
      %v566 = vmul.f32 %v550, 0.5
      %v567 = vmul.f32 %v551, 0.5
      %v568 = vmul.f32 %v552, 0.5
      %v569 = vmul.f32 %v553, 0.5
      %v570 = vmul.f32 %v554, 0.5
      %v571 = vmul.f32 %v555, 0.5
      %v572 = vmul.f32 %v556, 0.5
      %v573 = vmul.f32 %v557, 0.5
      %v574 = vmul.f32 %v558, 0.5
      %v575 = vmul.f32 %v559, 0.5
      %v576 = vmul.f32 %v560, 0.5
      %v577 = vmul.f32 %v561, 0.5
      %v578 = vmul.f32 %v562, 0.5
      %v579 = vmul.f32 %v563, 0.5
      %v580 = vmul.f32 %v564, 0.5
      %v581 = vadd.f32 %v565, 0.5
      %v582 = vadd.f32 %v566, 0.5
      %v583 = vadd.f32 %v567, 0.5
      %v584 = vadd.f32 %v568, 0.5
      %v585 = vadd.f32 %v569, 0.5
      %v586 = vadd.f32 %v570, 0.5
      %v587 = vadd.f32 %v571, 0.5
      %v588 = vadd.f32 %v572, 0.5
      %v589 = vadd.f32 %v573, 0.5
      %v590 = vadd.f32 %v574, 0.5
      %v591 = vadd.f32 %v575, 0.5
      %v592 = vadd.f32 %v576, 0.5
      %v593 = vadd.f32 %v577, 0.5
      %v594 = vadd.f32 %v578, 0.5
      %v595 = vadd.f32 %v579, 0.5
      %v596 = vadd.f32 %v580, 0.5
      %v597 = vld [vmem:[%s326] sm:$0x3]
      %598 = vset.pattern.permute.xlu0 4
      %599 = vperm.xlu0 %598, %v371
      %v600 = vpop.permute.xlu0 %599
      %602 = vset.pattern.permute.xlu0 4
      %603 = vperm.xlu0 %602, %v372
      %v604 = vpop.permute.xlu0 %603
      %606 = vset.pattern.permute.xlu0 4
      %607 = vperm.xlu0 %606, %v373
      %v608 = vpop.permute.xlu0 %607
      %610 = vset.pattern.permute.xlu0 4
      %611 = vperm.xlu0 %610, %v374
      %v612 = vpop.permute.xlu0 %611
      %614 = vset.pattern.permute.xlu0 4
      %615 = vperm.xlu0 %614, %v375
      %v616 = vpop.permute.xlu0 %615
      %618 = vset.pattern.permute.xlu0 4
      %619 = vperm.xlu0 %618, %v376
      %v620 = vpop.permute.xlu0 %619
      %622 = vset.pattern.permute.xlu0 4
      %623 = vperm.xlu0 %622, %v377
      %v624 = vpop.permute.xlu0 %623
      %626 = vset.pattern.permute.xlu0 4
      %627 = vperm.xlu0 %626, %v378
      %v628 = vpop.permute.xlu0 %627
      %v631 = vperm.slane %v597, 0
      %v632 = vperm.slane %v597, 1
      %v635 = vmul.f32 %v600, %v631
      %v636 = vmul.f32 %v600, %v632
      %v637 = vmul.f32 %v604, %v631
      %v638 = vmul.f32 %v604, %v632
      %v639 = vmul.f32 %v608, %v631
      %v640 = vmul.f32 %v608, %v632
      %v641 = vmul.f32 %v612, %v631
      %v642 = vmul.f32 %v612, %v632
      %v643 = vmul.f32 %v616, %v631
      %v644 = vmul.f32 %v616, %v632
      %v645 = vmul.f32 %v620, %v631
      %v646 = vmul.f32 %v620, %v632
      %v647 = vmul.f32 %v624, %v631
      %v648 = vmul.f32 %v624, %v632
      %v649 = vmul.f32 %v628, %v631
      %v650 = vmul.f32 %v628, %v632
      %v651 = vld [vmem:[%s331] sm:$0x3]
      %652 = vset.pattern.permute.xlu0 5
      %653 = vperm.xlu0 %652, %v371
      %v654 = vpop.permute.xlu0 %653
      %656 = vset.pattern.permute.xlu0 5
      %657 = vperm.xlu0 %656, %v372
      %v658 = vpop.permute.xlu0 %657
      %660 = vset.pattern.permute.xlu0 5
      %661 = vperm.xlu0 %660, %v373
      %v662 = vpop.permute.xlu0 %661
      %664 = vset.pattern.permute.xlu0 5
      %665 = vperm.xlu0 %664, %v374
      %v666 = vpop.permute.xlu0 %665
      %668 = vset.pattern.permute.xlu0 5
      %669 = vperm.xlu0 %668, %v375
      %v670 = vpop.permute.xlu0 %669
      %672 = vset.pattern.permute.xlu0 5
      %673 = vperm.xlu0 %672, %v376
      %v674 = vpop.permute.xlu0 %673
      %676 = vset.pattern.permute.xlu0 5
      %677 = vperm.xlu0 %676, %v377
      %v678 = vpop.permute.xlu0 %677
      %680 = vset.pattern.permute.xlu0 5
      %681 = vperm.xlu0 %680, %v378
      %v682 = vpop.permute.xlu0 %681
      %v685 = vperm.slane %v651, 0
      %v686 = vperm.slane %v651, 1
      %v689 = vmul.f32 %v654, %v685
      %v690 = vmul.f32 %v654, %v686
      %v691 = vmul.f32 %v658, %v685
      %v692 = vmul.f32 %v658, %v686
      %v693 = vmul.f32 %v662, %v685
      %v694 = vmul.f32 %v662, %v686
      %v695 = vmul.f32 %v666, %v685
      %v696 = vmul.f32 %v666, %v686
      %v697 = vmul.f32 %v670, %v685
      %v698 = vmul.f32 %v670, %v686
      %v699 = vmul.f32 %v674, %v685
      %v700 = vmul.f32 %v674, %v686
      %v701 = vmul.f32 %v678, %v685
      %v702 = vmul.f32 %v678, %v686
      %v703 = vmul.f32 %v682, %v685
      %v704 = vmul.f32 %v682, %v686
      %v705 = vadd.f32 %v635, %v689
      %v706 = vadd.f32 %v636, %v690
      %v707 = vadd.f32 %v637, %v691
      %v708 = vadd.f32 %v638, %v692
      %v709 = vadd.f32 %v639, %v693
      %v710 = vadd.f32 %v640, %v694
      %v711 = vadd.f32 %v641, %v695
      %v712 = vadd.f32 %v642, %v696
      %v713 = vadd.f32 %v643, %v697
      %v714 = vadd.f32 %v644, %v698
      %v715 = vadd.f32 %v645, %v699
      %v716 = vadd.f32 %v646, %v700
      %v717 = vadd.f32 %v647, %v701
      %v718 = vadd.f32 %v648, %v702
      %v719 = vadd.f32 %v649, %v703
      %v720 = vadd.f32 %v650, %v704
      %721 = vset.pattern.permute.xlu0 6
      %722 = vperm.xlu0 %721, %v371
      %v723 = vpop.permute.xlu0 %722
      %725 = vset.pattern.permute.xlu0 6
      %726 = vperm.xlu0 %725, %v372
      %v727 = vpop.permute.xlu0 %726
      %729 = vset.pattern.permute.xlu0 6
      %730 = vperm.xlu0 %729, %v373
      %v731 = vpop.permute.xlu0 %730
      %733 = vset.pattern.permute.xlu0 6
      %734 = vperm.xlu0 %733, %v374
      %v735 = vpop.permute.xlu0 %734
      %737 = vset.pattern.permute.xlu0 6
      %738 = vperm.xlu0 %737, %v375
      %v739 = vpop.permute.xlu0 %738
      %741 = vset.pattern.permute.xlu0 6
      %742 = vperm.xlu0 %741, %v376
      %v743 = vpop.permute.xlu0 %742
      %745 = vset.pattern.permute.xlu0 6
      %746 = vperm.xlu0 %745, %v377
      %v747 = vpop.permute.xlu0 %746
      %749 = vset.pattern.permute.xlu0 6
      %750 = vperm.xlu0 %749, %v378
      %v751 = vpop.permute.xlu0 %750
      %v753 = vadd.f32 %v705, %v723
      %v754 = vadd.f32 %v706, %v723
      %v755 = vadd.f32 %v707, %v727
      %v756 = vadd.f32 %v708, %v727
      %v757 = vadd.f32 %v709, %v731
      %v758 = vadd.f32 %v710, %v731
      %v759 = vadd.f32 %v711, %v735
      %v760 = vadd.f32 %v712, %v735
      %v761 = vadd.f32 %v713, %v739
      %v762 = vadd.f32 %v714, %v739
      %v763 = vadd.f32 %v715, %v743
      %v764 = vadd.f32 %v716, %v743
      %v765 = vadd.f32 %v717, %v747
      %v766 = vadd.f32 %v718, %v747
      %v767 = vadd.f32 %v719, %v751
      %v768 = vadd.f32 %v720, %v751
      %769 = vset.pattern.permute.xlu0 1
      %770 = vperm.xlu0 %769, %v371
      %v771 = vpop.permute.xlu0 %770
      %773 = vset.pattern.permute.xlu0 1
      %774 = vperm.xlu0 %773, %v372
      %v775 = vpop.permute.xlu0 %774
      %777 = vset.pattern.permute.xlu0 1
      %778 = vperm.xlu0 %777, %v373
      %v779 = vpop.permute.xlu0 %778
      %781 = vset.pattern.permute.xlu0 1
      %782 = vperm.xlu0 %781, %v374
      %v783 = vpop.permute.xlu0 %782
      %785 = vset.pattern.permute.xlu0 1
      %786 = vperm.xlu0 %785, %v375
      %v787 = vpop.permute.xlu0 %786
      %789 = vset.pattern.permute.xlu0 1
      %790 = vperm.xlu0 %789, %v376
      %v791 = vpop.permute.xlu0 %790
      %793 = vset.pattern.permute.xlu0 1
      %794 = vperm.xlu0 %793, %v377
      %v795 = vpop.permute.xlu0 %794
      %797 = vset.pattern.permute.xlu0 1
      %798 = vperm.xlu0 %797, %v378
      %v799 = vpop.permute.xlu0 %798
      %v801 = vmul.f32 %v771, %v581
      %v802 = vmul.f32 %v771, %v582
      %v803 = vmul.f32 %v775, %v583
      %v804 = vmul.f32 %v775, %v584
      %v805 = vmul.f32 %v779, %v585
      %v806 = vmul.f32 %v779, %v586
      %v807 = vmul.f32 %v783, %v587
      %v808 = vmul.f32 %v783, %v588
      %v809 = vmul.f32 %v787, %v589
      %v810 = vmul.f32 %v787, %v590
      %v811 = vmul.f32 %v791, %v591
      %v812 = vmul.f32 %v791, %v592
      %v813 = vmul.f32 %v795, %v593
      %v814 = vmul.f32 %v795, %v594
      %v815 = vmul.f32 %v799, %v595
      %v816 = vmul.f32 %v799, %v596
      %817 = vset.pattern.permute.xlu0 2
      %818 = vperm.xlu0 %817, %v371
      %v819 = vpop.permute.xlu0 %818
      %821 = vset.pattern.permute.xlu0 2
      %822 = vperm.xlu0 %821, %v372
      %v823 = vpop.permute.xlu0 %822
      %825 = vset.pattern.permute.xlu0 2
      %826 = vperm.xlu0 %825, %v373
      %v827 = vpop.permute.xlu0 %826
      %829 = vset.pattern.permute.xlu0 2
      %830 = vperm.xlu0 %829, %v374
      %v831 = vpop.permute.xlu0 %830
      %833 = vset.pattern.permute.xlu0 2
      %834 = vperm.xlu0 %833, %v375
      %v835 = vpop.permute.xlu0 %834
      %837 = vset.pattern.permute.xlu0 2
      %838 = vperm.xlu0 %837, %v376
      %v839 = vpop.permute.xlu0 %838
      %841 = vset.pattern.permute.xlu0 2
      %842 = vperm.xlu0 %841, %v377
      %v843 = vpop.permute.xlu0 %842
      %845 = vset.pattern.permute.xlu0 2
      %846 = vperm.xlu0 %845, %v378
      %v847 = vpop.permute.xlu0 %846
      %v849 = vadd.f32 %v801, %v819
      %v850 = vadd.f32 %v802, %v819
      %v851 = vadd.f32 %v803, %v823
      %v852 = vadd.f32 %v804, %v823
      %v853 = vadd.f32 %v805, %v827
      %v854 = vadd.f32 %v806, %v827
      %v855 = vadd.f32 %v807, %v831
      %v856 = vadd.f32 %v808, %v831
      %v857 = vadd.f32 %v809, %v835
      %v858 = vadd.f32 %v810, %v835
      %v859 = vadd.f32 %v811, %v839
      %v860 = vadd.f32 %v812, %v839
      %v861 = vadd.f32 %v813, %v843
      %v862 = vadd.f32 %v814, %v843
      %v863 = vadd.f32 %v815, %v847
      %v864 = vadd.f32 %v816, %v847
      %v865 = vmul.f32 %v581, %v849
      %v866 = vmul.f32 %v582, %v850
      %v867 = vmul.f32 %v583, %v851
      %v868 = vmul.f32 %v584, %v852
      %v869 = vmul.f32 %v585, %v853
      %v870 = vmul.f32 %v586, %v854
      %v871 = vmul.f32 %v587, %v855
      %v872 = vmul.f32 %v588, %v856
      %v873 = vmul.f32 %v589, %v857
      %v874 = vmul.f32 %v590, %v858
      %v875 = vmul.f32 %v591, %v859
      %v876 = vmul.f32 %v592, %v860
      %v877 = vmul.f32 %v593, %v861
      %v878 = vmul.f32 %v594, %v862
      %v879 = vmul.f32 %v595, %v863
      %v880 = vmul.f32 %v596, %v864
      %881 = vset.pattern.permute.xlu0 3
      %882 = vperm.xlu0 %881, %v371
      %v883 = vpop.permute.xlu0 %882
      %885 = vset.pattern.permute.xlu0 3
      %886 = vperm.xlu0 %885, %v372
      %v887 = vpop.permute.xlu0 %886
      %889 = vset.pattern.permute.xlu0 3
      %890 = vperm.xlu0 %889, %v373
      %v891 = vpop.permute.xlu0 %890
      %893 = vset.pattern.permute.xlu0 3
      %894 = vperm.xlu0 %893, %v374
      %v895 = vpop.permute.xlu0 %894
      %897 = vset.pattern.permute.xlu0 3
      %898 = vperm.xlu0 %897, %v375
      %v899 = vpop.permute.xlu0 %898
      %901 = vset.pattern.permute.xlu0 3
      %902 = vperm.xlu0 %901, %v376
      %v903 = vpop.permute.xlu0 %902
      %905 = vset.pattern.permute.xlu0 3
      %906 = vperm.xlu0 %905, %v377
      %v907 = vpop.permute.xlu0 %906
      %909 = vset.pattern.permute.xlu0 3
      %910 = vperm.xlu0 %909, %v378
      %v911 = vpop.permute.xlu0 %910
      %v913 = vmul.f32 %v883, %v469
      %v914 = vmul.f32 %v883, %v498
      %v915 = vmul.f32 %v887, %v471
      %v916 = vmul.f32 %v887, %v500
      %v917 = vmul.f32 %v891, %v474
      %v918 = vmul.f32 %v891, %v503
      %v919 = vmul.f32 %v895, %v476
      %v920 = vmul.f32 %v895, %v505
      %v921 = vmul.f32 %v899, %v479
      %v922 = vmul.f32 %v899, %v508
      %v923 = vmul.f32 %v903, %v481
      %v924 = vmul.f32 %v903, %v510
      %v925 = vmul.f32 %v907, %v484
      %v926 = vmul.f32 %v907, %v513
      %v927 = vmul.f32 %v911, %v486
      %v928 = vmul.f32 %v911, %v515
      %v929 = vadd.f32 %v865, %v913
      %v930 = vadd.f32 %v866, %v914
      %v931 = vadd.f32 %v867, %v915
      %v932 = vadd.f32 %v868, %v916
      %v933 = vadd.f32 %v869, %v917
      %v934 = vadd.f32 %v870, %v918
      %v935 = vadd.f32 %v871, %v919
      %v936 = vadd.f32 %v872, %v920
      %v937 = vadd.f32 %v873, %v921
      %v938 = vadd.f32 %v874, %v922
      %v939 = vadd.f32 %v875, %v923
      %v940 = vadd.f32 %v876, %v924
      %v941 = vadd.f32 %v877, %v925
      %v942 = vadd.f32 %v878, %v926
      %v943 = vadd.f32 %v879, %v927
      %v944 = vadd.f32 %v880, %v928
      %v945 = vadd.f32 %v929, %v753
      %v946 = vadd.f32 %v930, %v754
      %v947 = vadd.f32 %v931, %v755
      %v948 = vadd.f32 %v932, %v756
      %v949 = vadd.f32 %v933, %v757
      %v950 = vadd.f32 %v934, %v758
      %v951 = vadd.f32 %v935, %v759
      %v952 = vadd.f32 %v936, %v760
      %v953 = vadd.f32 %v937, %v761
      %v954 = vadd.f32 %v938, %v762
      %v955 = vadd.f32 %v939, %v763
      %v956 = vadd.f32 %v940, %v764
      %v957 = vadd.f32 %v941, %v765
      %v958 = vadd.f32 %v942, %v766
      %v959 = vadd.f32 %v943, %v767
      %v960 = vadd.f32 %v944, %v768
      %961 = vst [vmem:[%s351] sm:$0xff] %v945
      %962 = vst [vmem:[%s351 + $0x8] sm:$0xff] %v946
      %963 = vst [vmem:[%s351 + $0x10] sm:$0xff] %v947
      %964 = vst [vmem:[%s351 + $0x18] sm:$0xff] %v948
      %965 = vst [vmem:[%s351 + $0x20] sm:$0xff] %v949
      %966 = vst [vmem:[%s351 + $0x28] sm:$0xff] %v950
      %967 = vst [vmem:[%s351 + $0x30] sm:$0xff] %v951
      %968 = vst [vmem:[%s351 + $0x38] sm:$0xff] %v952
      %969 = vst [vmem:[%s351 + $0x40] sm:$0xff] %v953
      %970 = vst [vmem:[%s351 + $0x48] sm:$0xff] %v954
      %971 = vst [vmem:[%s351 + $0x50] sm:$0xff] %v955
      %972 = vst [vmem:[%s351 + $0x58] sm:$0xff] %v956
      %973 = vst [vmem:[%s351 + $0x60] sm:$0xff] %v957
      %974 = vst [vmem:[%s351 + $0x68] sm:$0xff] %v958
      %975 = vst [vmem:[%s351 + $0x70] sm:$0x1] %v959
      %976 = vst [vmem:[%s351 + $0x78] sm:$0x1] %v960
      %s977 = smul.u32 2, %s23
      %p978 = scmp.lt.s32.totalorder %s22, 1
      %s979 = scalar_select %p978, %s22, 1
      %p980 = scmp.lt.s32.totalorder %s977, 1
      %s981 = scalar_select %p980, %s977, 1
      %s982 = smul.addr %s979, 16
      %s983 = sadd.s32 %s981, %s982
      %s984 = smul.addr %s983, 8
      %s985 = scalar_lea.vmem %s5, %s984
      %s986 = smul.u32 2, %s23
      %p987 = scmp.lt.s32.totalorder %s22, 1
      %s988 = scalar_select %p987, %s22, 1
      %p989 = scmp.lt.s32.totalorder %s986, 1
      %s990 = scalar_select %p989, %s986, 1
      %s991 = smul.addr %s988, 16
      %s992 = sadd.s32 %s990, %s991
      %s993 = smul.addr %s992, 8
      %s994 = scalar_lea.vmem %s6, %s993
      // Predicated region
      $region41: #{tpu_custom_call.1} parent=39 // pred_check
        %p995 = pneg %p172
      $region42: #{tpu_custom_call.1} parent=39 // pred_check_branch
        %997 = sbr.rel (%p995) target = $region44
      $region43: #{tpu_custom_call.1} parent=39 // pred_region
        %s998 = smul.u32 2, %s23
      $region44: #{tpu_custom_call.1} parent=39 // pred_fallthru
        _
      // Predicated region
      $region45: #{tpu_custom_call.1} parent=39 // pred_check
        %p999 = pneg %p200
      $region46: #{tpu_custom_call.1} parent=39 // pred_check_branch
        %1001 = sbr.rel (%p999) target = $region48
      $region47: #{tpu_custom_call.1} parent=39 // pred_region
        %s1002 = smul.u32 2, %s23
      $region48: #{tpu_custom_call.1} parent=39 // pred_fallthru
        _
    $region40: #{tpu_custom_call.1} parent=5 // pred_fallthru
      _
    %p1003 = scmp.le.s32.totalorder 2, %s13
    // Predicated region
    $region49: #{tpu_custom_call.1} parent=5 // pred_check
      %p1004 = pneg %p1003
    $region50: #{tpu_custom_call.1} parent=5 // pred_check_branch
      %1006 = sbr.rel (%p1004) target = $region52
    $region51: #{tpu_custom_call.1} parent=5 // pred_region
      %s1007 = ssub.s32 %s13, 2
      // Predicated region
      $region53: #{tpu_custom_call.1} parent=51 // pred_check
        %p1008 = pneg %p178
      $region54: #{tpu_custom_call.1} parent=51 // pred_check_branch
        %1010 = sbr.rel (%p1008) target = $region56
      $region55: #{tpu_custom_call.1} parent=51 // pred_region
        %s1011 = smul.u32 2, %s25
        %p1012 = scmp.lt.s32.totalorder %s24, 1
        %s1013 = scalar_select %p1012, %s24, 1
        %p1014 = scmp.lt.s32.totalorder %s1011, 1
        %s1015 = scalar_select %p1014, %s1011, 1
        %s1016 = smul.addr %s1013, 16
        %s1017 = sadd.s32 %s1015, %s1016
        %s1018 = smul.addr %s1017, 8
        %s1019 = scalar_lea.vmem %s5, %s1018
      $region56: #{tpu_custom_call.1} parent=51 // pred_fallthru
        _
      // Predicated region
      $region57: #{tpu_custom_call.1} parent=51 // pred_check
        %p1020 = pneg %p206
      $region58: #{tpu_custom_call.1} parent=51 // pred_check_branch
        %1022 = sbr.rel (%p1020) target = $region60
      $region59: #{tpu_custom_call.1} parent=51 // pred_region
        %s1023 = smul.u32 2, %s25
        %p1024 = scmp.lt.s32.totalorder %s24, 1
        %s1025 = scalar_select %p1024, %s24, 1
        %p1026 = scmp.lt.s32.totalorder %s1023, 1
        %s1027 = scalar_select %p1026, %s1023, 1
        %s1028 = smul.addr %s1025, 16
        %s1029 = sadd.s32 %s1027, %s1028
        %s1030 = smul.addr %s1029, 8
        %s1031 = scalar_lea.vmem %s6, %s1030
      $region60: #{tpu_custom_call.1} parent=51 // pred_fallthru
        _
    $region52: #{tpu_custom_call.1} parent=5 // pred_fallthru
      _
  $region6: #{tpu_custom_call.1} parent=0 // loop_footer
    %s17 = sadd.s32 1, %s13
  $region7: #{tpu_custom_call.1} parent=0 // loop_footer_branch
    %12 = sbr.rel target = $region3
  $region8: #{tpu_custom_call.1} parent=0 // loop_exit
    _

</llo_original>
